<compile_context>
chip_gen: v7x
topology: tpu7x:2x2x1
jax: 0.10.0
libtpu: 0.0.40
codegen_flags: <defaults>
</compile_context>

<pallas_src>
import jax
import jax.numpy as jnp
from jax.experimental import pallas as pl
from jax.experimental.pallas import tpu as pltpu


# ---------------------------------------------------------------------------
# Kernel
# ---------------------------------------------------------------------------
def gnn_plus_kernel(adj_ref, xw_ref, xproj_ref,
                    w1_ref, b1_ref, w2_ref, b2_ref,
                    o_ref, acc_ref):
    """Grid = (row tiles i [parallel], adj-contraction tiles k [arbitrary])."""
    k = pl.program_id(1)

    @pl.when(k == 0)
    def _init():
        acc_ref[...] = jnp.zeros_like(acc_ref)

    # h partial: acc += adj[i_tile, k_tile] @ xw[k_tile]   (bf16 MXU operands, f32 acc)
    acc_ref[...] += jnp.dot(adj_ref[...], xw_ref[...],
                            preferred_element_type=jnp.float32)

    @pl.when(k == pl.num_programs(1) - 1)
    def _finalize():
        # norm = Identity, drop = identity (eval), then ReLU
        h = jnp.maximum(acc_ref[...], 0.0)

        # mlp(x_proj + h): Linear -> ReLU -> Linear (bf16 MXU operands, f32 elementwise)
        z = (xproj_ref[...].astype(jnp.float32) + h).astype(jnp.bfloat16)
        m = jnp.dot(z, w1_ref[...], preferred_element_type=jnp.float32) + b1_ref[...]
        m = jnp.maximum(m, 0.0).astype(jnp.bfloat16)
        m = jnp.dot(m, w2_ref[...], preferred_element_type=jnp.float32) + b2_ref[...]

        # residual: h + mlp(x_proj + h)
        o_ref[...] = (h + m).astype(o_ref.dtype)


# ---------------------------------------------------------------------------
# Wrapper: one-time prepare (pad/cast adjacency + weights) and per-call kernel
# ---------------------------------------------------------------------------
def _round_up(a, b):
    return (a + b - 1) // b * b


def _pad2(a, rows, cols):
    return jnp.pad(a, ((0, rows - a.shape[0]), (0, cols - a.shape[1])))


def prepare_gnn_plus(adj, params, *, tm=512, tk=1024):
    """One-time (cacheable) padding / casting of the O(N^2) adjacency and weights.

    Zero padding is mathematically exact: padded adj columns are zero so padded xw
    rows contribute nothing, and padded weight rows/cols are zero so padded feature
    lanes stay zero; padded output rows/cols are sliced off.
    """
    N = adj.shape[0]
    dout = params["wp"].shape[1]
    hid = params["w1"].shape[1]
    doutP = _round_up(dout, 128)
    hidP = _round_up(hid, 128)

    # >= 2 row tiles so v7x's dual TensorCores both get work on the "parallel" axis;
    # tm multiple of 8 (sublane), tk multiple of 128 (lane).
    tm_eff = max(8, min(tm, _round_up(-(-N // 2), 8)))
    tk_eff = max(128, min(tk, _round_up(N, 128)))
    np_rows = _round_up(N, tm_eff)
    np_cols = _round_up(N, tk_eff)

    bf16 = jnp.bfloat16
    return {
        # TODO(synk): on v7x consider fp8(e4m3) adjacency, on v5e/v6e int8 (per-row
        # scaled) adjacency to halve the dominant HBM stream again; validate accuracy.
        "adj_p": _pad2(adj, np_rows, np_cols).astype(bf16),
        "w1_p": _pad2(params["w1"], doutP, hidP).astype(bf16),
        "b1_p": _pad2(params["b1"], 1, hidP).astype(jnp.float32),
        "w2_p": _pad2(params["w2"], hidP, doutP).astype(bf16),
        "b2_p": _pad2(params["b2"], 1, doutP).astype(jnp.float32),
        "N": N, "dout": dout, "doutP": doutP, "hidP": hidP,
        "tm": tm_eff, "tk": tk_eff, "np_rows": np_rows, "np_cols": np_cols,
    }


def gnn_plus_layer(x, params, prep):
    """x: [N, din] f32; prep: output of prepare_gnn_plus (padded adj / weights)."""
    N, dout = prep["N"], prep["dout"]
    doutP, hidP = prep["doutP"], prep["hidP"]
    tm, tk = prep["tm"], prep["tk"]
    np_rows, np_cols = prep["np_rows"], prep["np_cols"]
    bf16 = jnp.bfloat16

    # Hoisted per-call precompute (plain XLA, fuses upstream):
    #   xw     = x @ Wc + bc   (conv node-feature transform; streamed per k tile)
    #   x_proj = x @ Wp + bp   (proj branch; read once per i tile)
    xw = jnp.dot(x, params["wc"]) + params["bc"]
    x_proj = jnp.dot(x, params["wp"]) + params["bp"]
    xw_p = _pad2(xw, np_cols, doutP).astype(bf16)
    xproj_p = _pad2(x_proj, np_rows, doutP).astype(bf16)

    grid = (np_rows // tm, np_cols // tk)
    const = lambda i, k: (0, 0)  # weights / biases: VMEM-resident full blocks

    # VMEM budget: double-buffered streamed operands + resident weights + accumulator.
    vmem_need = (2 * tm * tk * 2                            # adj tiles (bf16)
                 + 2 * tk * doutP * 2                       # xw tiles
                 + 2 * tm * doutP * 2                       # x_proj tiles
                 + 2 * tm * doutP * 4                       # output tiles
                 + tm * doutP * 4                           # f32 accumulator scratch
                 + 2 * (doutP * hidP + hidP * doutP) * 2    # W1, W2
                 + 2 * (hidP + 2 * doutP) * 4)              # biases
    vmem_limit = max(32 * 1024 * 1024, min(48 * 1024 * 1024, 2 * vmem_need))

    # Advisory cost estimate (kernel-only work; xw / x_proj are computed upstream).
    n_i = np_rows // tm
    flops = (2 * np_rows * np_cols * doutP       # adj contraction
             + 2 * np_rows * doutP * hidP        # mlp layer 1
             + 2 * np_rows * hidP * doutP)       # mlp layer 2
    bytes_accessed = (prep["adj_p"].size * 2
                      + n_i * np_cols * doutP * 2            # xw re-read per row tile
                      + np_rows * doutP * 2                  # x_proj
                      + (prep["w1_p"].size + prep["w2_p"].size) * 2
                      + (prep["b1_p"].size + prep["b2_p"].size) * 4
                      + np_rows * doutP * 4)                 # output

    out_p = pl.pallas_call(
        gnn_plus_kernel,
        out_shape=jax.ShapeDtypeStruct((np_rows, doutP), jnp.float32),
        grid_spec=pltpu.PrefetchScalarGridSpec(
            num_scalar_prefetch=0,
            grid=grid,
            in_specs=[
                # adj tile: the only operand whose block changes every grid step.
                # TODO(synk): if profiling shows the adj DMA still exposed at these tile
                # sizes, add pipeline_mode=pl.Buffered(3) on this spec only.
                pl.BlockSpec((tm, tk), lambda i, k: (i, k)),
                pl.BlockSpec((tk, doutP), lambda i, k: (k, 0)),   # xw[k_tile]
                pl.BlockSpec((tm, doutP), lambda i, k: (i, 0)),   # x_proj[i_tile]
                pl.BlockSpec((doutP, hidP), const),               # W1
                pl.BlockSpec((1, hidP), const),                   # b1
                pl.BlockSpec((hidP, doutP), const),               # W2
                pl.BlockSpec((1, doutP), const),                  # b2
            ],
            out_specs=pl.BlockSpec((tm, doutP), lambda i, k: (i, 0)),
            scratch_shapes=[pltpu.VMEM((tm, doutP), jnp.float32)],
        ),
        compiler_params=pltpu.CompilerParams(
            # row tiles independent -> "parallel" (v7x dual-TC sharding);
            # adj contraction carries the accumulator -> "arbitrary".
            dimension_semantics=("parallel", "arbitrary"),
            vmem_limit_bytes=int(vmem_limit),
        ),
        cost_estimate=pl.CostEstimate(flops=int(flops), transcendentals=0,
                                      bytes_accessed=int(bytes_accessed)),
    )(prep["adj_p"], xw_p, xproj_p,
      prep["w1_p"], prep["b1_p"], prep["w2_p"], prep["b2_p"])

    return out_p[:N, :dout]


# ---------------------------------------------------------------------------
# Reference (mirrors the kernel's bf16-operand / f32-accumulate arithmetic)
# ---------------------------------------------------------------------------
def reference(x, adj, params):
    bf = jnp.bfloat16
    xw = (jnp.dot(x, params["wc"]) + params["bc"]).astype(bf)
    x_proj = (jnp.dot(x, params["wp"]) + params["bp"]).astype(bf)
    h = jnp.dot(adj.astype(bf), xw, preferred_element_type=jnp.float32)
    h = jnp.maximum(h, 0.0)
    z = (x_proj.astype(jnp.float32) + h).astype(bf)
    m = jnp.dot(z, params["w1"].astype(bf),
                preferred_element_type=jnp.float32) + params["b1"]
    m = jnp.maximum(m, 0.0).astype(bf)
    m = jnp.dot(m, params["w2"].astype(bf),
                preferred_element_type=jnp.float32) + params["b2"]
    return h + m


# ---------------------------------------------------------------------------
# Test harness
# ---------------------------------------------------------------------------
def make_params(key, din, dout):
    ks = jax.random.split(key, 6)
    scale_p = 1.0 / jnp.sqrt(din)
    scale_1 = 1.0 / jnp.sqrt(dout)
    scale_2 = 1.0 / jnp.sqrt(2 * dout)
    return {
        "wp": jax.random.normal(ks[0], (din, dout), jnp.float32) * scale_p,
        "bp": jnp.zeros((1, dout), jnp.float32),
        "wc": jax.random.normal(ks[1], (din, dout), jnp.float32) * scale_p,
        "bc": jax.random.normal(ks[2], (1, dout), jnp.float32) * 0.01,
        "w1": jax.random.normal(ks[3], (dout, 2 * dout), jnp.float32) * scale_1,
        "b1": jnp.zeros((1, 2 * dout), jnp.float32),
        "w2": jax.random.normal(ks[4], (2 * dout, dout), jnp.float32) * scale_2,
        "b2": jnp.zeros((1, dout), jnp.float32),
    }


def make_normalized_adj(key, n):
    # random symmetric graph + self loops, D^{-1/2} A D^{-1/2} (GCN normalization)
    a = (jax.random.uniform(key, (n, n)) > 0.6).astype(jnp.float32)
    a = jnp.maximum(a, a.T)
    a = a + jnp.eye(n, dtype=jnp.float32)
    a = jnp.minimum(a, 1.0)
    deg = a.sum(axis=1)
    d_inv_sqrt = 1.0 / jnp.sqrt(deg)
    return a * d_inv_sqrt[:, None] * d_inv_sqrt[None, :]


if __name__ == "__main__":
    key = jax.random.PRNGKey(0)
    k_x, k_a, k_p = jax.random.split(key, 3)

    # Small graph that still exercises node / feature padding and a multi-row-tile grid.
    N, din, dout = 200, 48, 64

    x = jax.random.normal(k_x, (N, din), jnp.float32)
    adj = make_normalized_adj(k_a, N)
    params = make_params(k_p, din, dout)

    prep = prepare_gnn_plus(adj, params)      # one-time pad/cast of adj + weights (cacheable)
    out = gnn_plus_layer(x, params, prep)
    out = jax.block_until_ready(out)

    ref = reference(x, adj, params)
    assert out.shape == (N, dout)
    # Reference mirrors the kernel's bf16-operand / f32-accumulate arithmetic; the gap
    # vs a pure-f32 forward is the expected ~3-digit bf16 loss on the adj stream.
    assert jnp.allclose(out, ref, atol=1e-2, rtol=1e-2), "mismatch vs reference"

    print("KERNEL_OK")
</pallas_src>

<mosaic_0001>
module attributes {stable_mosaic.version = 11 : i64} {
  func.func @gnn_plus_kernel(%arg0: i32, %arg1: i32, %arg2: memref<104x256xbf16, #tpu.memory_space<vmem>>, %arg3: memref<256x128xbf16, #tpu.memory_space<vmem>>, %arg4: memref<104x128xbf16, #tpu.memory_space<vmem>>, %arg5: memref<128x128xbf16, #tpu.memory_space<vmem>>, %arg6: memref<1x128xf32, #tpu.memory_space<vmem>>, %arg7: memref<128x128xbf16, #tpu.memory_space<vmem>>, %arg8: memref<1x128xf32, #tpu.memory_space<vmem>>, %arg9: memref<104x128xf32, #tpu.memory_space<vmem>>, %arg10: memref<104x128xf32, #tpu.memory_space<vmem>>) attributes {dimension_semantics = [#tpu.dimension_semantics<parallel>, #tpu.dimension_semantics<arbitrary>], iteration_bounds = array<i64: 2, 1>, scalar_prefetch = 0 : i64, scratch_operands = 1 : i64, tpu.core_type = #tpu.core_type<tc>, window_params = [{transform_indices = @transform_0, window_bounds = array<i64: 104, 256>}, {transform_indices = @transform_1, window_bounds = array<i64: 256, 128>}, {transform_indices = @transform_2, window_bounds = array<i64: 104, 128>}, {pipeline_mode = #tpu.pipeline_mode<synchronous>, transform_indices = @transform_3, window_bounds = array<i64: 128, 128>}, {pipeline_mode = #tpu.pipeline_mode<synchronous>, transform_indices = @transform_4, window_bounds = array<i64: 1, 128>}, {pipeline_mode = #tpu.pipeline_mode<synchronous>, transform_indices = @transform_5, window_bounds = array<i64: 128, 128>}, {pipeline_mode = #tpu.pipeline_mode<synchronous>, transform_indices = @transform_6, window_bounds = array<i64: 1, 128>}, {transform_indices = @transform_7, window_bounds = array<i64: 104, 128>}]} {
    %c0_i32 = arith.constant 0 : i32
    %0 = arith.cmpi eq, %arg1, %c0_i32 : i32
    %1 = arith.extui %0 : i1 to i32
    %c0_i32_0 = arith.constant 0 : i32
    %2 = arith.cmpi ne, %1, %c0_i32_0 : i32
    scf.if %2 {
      %cst_10 = arith.constant 0.000000e+00 : f32
      %12 = vector.broadcast %cst_10 : f32 to vector<104x128xf32>
      %c0_11 = arith.constant 0 : index
      %c0_12 = arith.constant 0 : index
      %13 = vector.load %arg10[%c0_11, %c0_12] : memref<104x128xf32, #tpu.memory_space<vmem>>, vector<104x128xf32>
      tpu.vector_store %arg10[%c0_11, %c0_12], %12 {strides = array<i32>} : memref<104x128xf32, #tpu.memory_space<vmem>>, vector<104x128xf32>,
    } else {
    }
    %c0 = arith.constant 0 : index
    %c0_1 = arith.constant 0 : index
    %3 = vector.load %arg10[%c0, %c0_1] : memref<104x128xf32, #tpu.memory_space<vmem>>, vector<104x128xf32>
    %c0_2 = arith.constant 0 : index
    %c0_3 = arith.constant 0 : index
    %4 = vector.load %arg2[%c0_2, %c0_3] : memref<104x256xbf16, #tpu.memory_space<vmem>>, vector<104x256xbf16>
    %c0_4 = arith.constant 0 : index
    %c0_5 = arith.constant 0 : index
    %5 = vector.load %arg3[%c0_4, %c0_5] : memref<256x128xbf16, #tpu.memory_space<vmem>>, vector<256x128xbf16>
    %cst = arith.constant dense<0.000000e+00> : vector<104x128xf32>
    %6 = tpu.matmul %4, %5, %cst {dimension_numbers = #tpu.dot_dimension_numbers<[1], [0], [0], [1], [0, 0, 1, 1], [], []>} : vector<104x256xbf16>, vector<256x128xbf16>, vector<104x128xf32> -> vector<104x128xf32>
    %7 = arith.addf %3, %6 : vector<104x128xf32>
    %c0_6 = arith.constant 0 : index
    %c0_7 = arith.constant 0 : index
    %8 = vector.load %arg10[%c0_6, %c0_7] : memref<104x128xf32, #tpu.memory_space<vmem>>, vector<104x128xf32>
    tpu.vector_store %arg10[%c0_6, %c0_7], %7 {strides = array<i32>} : memref<104x128xf32, #tpu.memory_space<vmem>>, vector<104x128xf32>,
    %c0_i32_8 = arith.constant 0 : i32
    %9 = arith.cmpi eq, %arg1, %c0_i32_8 : i32
    %10 = arith.extui %9 : i1 to i32
    %c0_i32_9 = arith.constant 0 : i32
    %11 = arith.cmpi ne, %10, %c0_i32_9 : i32
    scf.if %11 {
      %c0_10 = arith.constant 0 : index
      %c0_11 = arith.constant 0 : index
      %12 = vector.load %arg10[%c0_10, %c0_11] : memref<104x128xf32, #tpu.memory_space<vmem>>, vector<104x128xf32>
      %cst_12 = arith.constant 0.000000e+00 : f32
      %13 = vector.broadcast %cst_12 : f32 to vector<104x128xf32>
      %14 = arith.maximumf %12, %13 : vector<104x128xf32>
      %c0_13 = arith.constant 0 : index
      %c0_14 = arith.constant 0 : index
      %15 = vector.load %arg4[%c0_13, %c0_14] : memref<104x128xbf16, #tpu.memory_space<vmem>>, vector<104x128xbf16>
      %16 = arith.extf %15 : vector<104x128xbf16> to vector<104x128xf32>
      %17 = arith.addf %16, %14 : vector<104x128xf32>
      %18 = arith.truncf %17 : vector<104x128xf32> to vector<104x128xbf16>
      %c0_15 = arith.constant 0 : index
      %c0_16 = arith.constant 0 : index
      %19 = vector.load %arg5[%c0_15, %c0_16] : memref<128x128xbf16, #tpu.memory_space<vmem>>, vector<128x128xbf16>
      %cst_17 = arith.constant dense<0.000000e+00> : vector<104x128xf32>
      %20 = tpu.matmul %18, %19, %cst_17 {dimension_numbers = #tpu.dot_dimension_numbers<[1], [0], [0], [1], [0, 0, 1, 1], [], []>} : vector<104x128xbf16>, vector<128x128xbf16>, vector<104x128xf32> -> vector<104x128xf32>
      %c0_18 = arith.constant 0 : index
      %c0_19 = arith.constant 0 : index
      %21 = vector.load %arg6[%c0_18, %c0_19] : memref<1x128xf32, #tpu.memory_space<vmem>>, vector<1x128xf32>
      %22 = vector.broadcast %21 : vector<1x128xf32> to vector<104x128xf32>
      %23 = arith.addf %20, %22 : vector<104x128xf32>
      %cst_20 = arith.constant 0.000000e+00 : f32
      %24 = vector.broadcast %cst_20 : f32 to vector<104x128xf32>
      %25 = arith.maximumf %23, %24 : vector<104x128xf32>
      %26 = arith.truncf %25 : vector<104x128xf32> to vector<104x128xbf16>
      %c0_21 = arith.constant 0 : index
      %c0_22 = arith.constant 0 : index
      %27 = vector.load %arg7[%c0_21, %c0_22] : memref<128x128xbf16, #tpu.memory_space<vmem>>, vector<128x128xbf16>
      %cst_23 = arith.constant dense<0.000000e+00> : vector<104x128xf32>
      %28 = tpu.matmul %26, %27, %cst_23 {dimension_numbers = #tpu.dot_dimension_numbers<[1], [0], [0], [1], [0, 0, 1, 1], [], []>} : vector<104x128xbf16>, vector<128x128xbf16>, vector<104x128xf32> -> vector<104x128xf32>
      %c0_24 = arith.constant 0 : index
      %c0_25 = arith.constant 0 : index
      %29 = vector.load %arg8[%c0_24, %c0_25] : memref<1x128xf32, #tpu.memory_space<vmem>>, vector<1x128xf32>
      %30 = vector.broadcast %29 : vector<1x128xf32> to vector<104x128xf32>
      %31 = arith.addf %28, %30 : vector<104x128xf32>
      %32 = arith.addf %14, %31 : vector<104x128xf32>
      %c0_26 = arith.constant 0 : index
      %c0_27 = arith.constant 0 : index
      %33 = vector.load %arg9[%c0_26, %c0_27] : memref<104x128xf32, #tpu.memory_space<vmem>>, vector<104x128xf32>
      tpu.vector_store %arg9[%c0_26, %c0_27], %32 {strides = array<i32>} : memref<104x128xf32, #tpu.memory_space<vmem>>, vector<104x128xf32>,
    } else {
    }
    return
  }
  func.func @transform_0(%arg0: i32, %arg1: i32) -> (i32, i32) {
    %c0_i32 = arith.constant 0 : i32
    return %arg0, %arg1 : i32, i32
  }
  func.func @transform_1(%arg0: i32, %arg1: i32) -> (i32, i32) {
    %c0_i32 = arith.constant 0 : i32
    %c0_i32_0 = arith.constant 0 : i32
    return %arg1, %c0_i32 : i32, i32
  }
  func.func @transform_2(%arg0: i32, %arg1: i32) -> (i32, i32) {
    %c0_i32 = arith.constant 0 : i32
    %c0_i32_0 = arith.constant 0 : i32
    return %arg0, %c0_i32 : i32, i32
  }
  func.func @transform_3(%arg0: i32, %arg1: i32) -> (i32, i32) {
    %c0_i32 = arith.constant 0 : i32
    %c0_i32_0 = arith.constant 0 : i32
    %c0_i32_1 = arith.constant 0 : i32
    return %c0_i32, %c0_i32_0 : i32, i32
  }
  func.func @transform_4(%arg0: i32, %arg1: i32) -> (i32, i32) {
    %c0_i32 = arith.constant 0 : i32
    %c0_i32_0 = arith.constant 0 : i32
    %c0_i32_1 = arith.constant 0 : i32
    return %c0_i32, %c0_i32_0 : i32, i32
  }
  func.func @transform_5(%arg0: i32, %arg1: i32) -> (i32, i32) {
    %c0_i32 = arith.constant 0 : i32
    %c0_i32_0 = arith.constant 0 : i32
    %c0_i32_1 = arith.constant 0 : i32
    return %c0_i32, %c0_i32_0 : i32, i32
  }
  func.func @transform_6(%arg0: i32, %arg1: i32) -> (i32, i32) {
    %c0_i32 = arith.constant 0 : i32
    %c0_i32_0 = arith.constant 0 : i32
    %c0_i32_1 = arith.constant 0 : i32
    return %c0_i32, %c0_i32_0 : i32, i32
  }
  func.func @transform_7(%arg0: i32, %arg1: i32) -> (i32, i32) {
    %c0_i32 = arith.constant 0 : i32
    %c0_i32_0 = arith.constant 0 : i32
    return %arg0, %c0_i32 : i32, i32
  }
}

</mosaic_0001>

<llo_original>
// kernel: tpu_custom_call.1
$region0: #{tpu_custom_call.1}
  #allocation0 [shape = 'u32[]', space=smem, size = 0x4, offset = 0x4, fixed_abs, tag = 'smem constant byte address 0x4 - core index']
  #allocation1 [shape = 'u32[144,128]{1,0:T(1,128)}', space=vmem, size = 0x12000, scoped, tag = 'internal scratch']
  #allocation2 [shape = 'f32[104,128]{1,0:T(8,128)}', space=vmem, size = 0xd000, scoped, tag = 'scratch operand']
  %s0 = inlined_call_operand.hbm [shape: bf16[208,256], index: 0, kind: input, shape index: {}]
  %s1 = inlined_call_operand.hbm [shape: bf16[256,128], index: 1, kind: input, shape index: {}]
  %s2 = inlined_call_operand.hbm [shape: bf16[208,128], index: 2, kind: input, shape index: {}]
  %s3 = inlined_call_operand.hbm [shape: bf16[128,128], index: 3, kind: input, shape index: {}]
  %s4 = inlined_call_operand.vmem [shape: f32[1,128], index: 4, kind: input, shape index: {}]
  %s5 = inlined_call_operand.hbm [shape: bf16[128,128], index: 5, kind: input, shape index: {}]
  %s6 = inlined_call_operand.vmem [shape: f32[1,128], index: 6, kind: input, shape index: {}]
  %s7 = inlined_call_operand.hbm [shape: f32[208,128], index: 7, kind: output, shape index: {}]
  %s8 = sld [smem:[#allocation0]]
  $region89: #{tpu_custom_call.1} parent=0
    _
  %s10 = ssub.s32 1, %s8
  %s11 = scalar_select 0, %s10, %s8
  $region1: #{tpu_custom_call.1} parent=0
    #allocation3 [shape = 'u8[106496]{0}', space=vmem, size = 0x1a000, scoped, tag = 'input window, operand 0']
    #allocation4 [shape = 's32[2]{0}', space=sflag, size = 0x8, scoped, tag = 'scoped memory for tpu_custom_call.1']
    #allocation5 [shape = 's32[2]{0}', space=sflag, size = 0x8, scoped, tag = 'scoped memory for tpu_custom_call.1']
    #allocation6 [shape = 'u8[65536]{0}', space=vmem, size = 0x10000, scoped, tag = 'input window, operand 1, single buffered']
    #allocation7 [shape = 's32[1]{0}', space=sflag, size = 0x4, scoped, tag = 'scoped memory for tpu_custom_call.1']
    #allocation8 [shape = 'u8[53248]{0}', space=vmem, size = 0xd000, scoped, tag = 'input window, operand 2']
    #allocation9 [shape = 'u8[32768]{0}', space=vmem, size = 0x8000, scoped, tag = 'input window, operand 3, single buffered']
    #allocation10 [shape = 'u8[32768]{0}', space=vmem, size = 0x8000, scoped, tag = 'input window, operand 5, single buffered']
    #allocation11 [shape = 's32[1]{0}', space=sflag, size = 0x4, scoped, tag = 'scoped memory for tpu_custom_call.1']
    #allocation12 [shape = 'u8[106496]{0}', space=vmem, size = 0x1a000, scoped, tag = 'output window, operand 0']
    %12 = vsyncpa [#allocation4], 0
    %s13 = scalar_lea.sflag [#allocation4], 1
    %14 = vsyncpa %s13, 0
    %15 = vsyncpa [#allocation7], 0
    %16 = vsyncpa [#allocation11], 0
    %17 = vsyncpa [#allocation5], 0
    %s18 = scalar_lea.sflag [#allocation5], 1
    %19 = vsyncpa %s18, 0
    loop: start=0, step=1, limit=4
    $region2: #{tpu_custom_call.1} parent=1 // loop_pre_header
      _
    $region3: #{tpu_custom_call.1} parent=1 // loop_header
      %s21 = sphi 0, %s25
      %p22 = scmp.ge.s32.totalorder %s21, 4
      %s28 = sphi 0, %s40
      %s29 = sphi 0, %s36
      %s30 = sphi 0, %s28
      %s31 = sphi 0, %s29
      %s32 = sphi 0, %s30
      %s33 = sphi 0, %s31
      %s45 = sphi 0, %s47
      %s48 = sphi 0, %s45
      %s49 = sphi 0, %s48
      %s65 = sphi 0, %s49
      %s71 = sphi 0, %s73
      %s74 = sphi 0, %s71
      %s75 = sphi 0, %s74
      %s91 = sphi 0, %s75
      %s97 = sphi 0, %s99
      %s100 = sphi 0, %s97
      %s101 = sphi 0, %s100
      %s117 = sphi 0, %s101
      %s121 = sphi 0, %s121
      %s123 = sphi 0, %s121
      %s124 = sphi 0, %s123
      %s138 = sphi 0, %s124
      %s142 = sphi 0, %s142
      %s144 = sphi 0, %s142
      %s145 = sphi 0, %s144
      %s159 = sphi 0, %s145
      %s163 = sphi 0, %s163
      %s165 = sphi 0, %s163
      %s166 = sphi 0, %s165
      %s180 = sphi 0, %s166
      %s184 = sphi 0, %s184
      %s186 = sphi 0, %s184
      %s187 = sphi 0, %s186
      %s201 = sphi 0, %s187
      %s207 = sphi 0, %s209
      %s210 = sphi 0, %s207
      %s211 = sphi 0, %s210
      %s227 = sphi 0, %s211
    $region4: #{tpu_custom_call.1} parent=1 // loop_header_branch
      %24 = sbr.rel (%p22) target = $region8
    $region5: #{tpu_custom_call.1} parent=1 // loop_body
      %s26 = ssub.s32 %s21, 1
      %s27 = ssub.s32 %s21, 2
      %s34 = sadd.s32 1, %s29
      %p35 = scmp.ge.s32.totalorder %s34, 1
      %s36 = scalar_select %p35, 0, %s34
      %s37 = sadd.s32 1, %s28
      %s38 = scalar_select %p35, %s37, %s28
      %p39 = scmp.ge.s32.totalorder %s38, 2
      %s40 = scalar_select %p39, 0, %s38
      %s41 = ssub.s32 %s28, %s40
      %s42 = ssub.s32 %s29, %s36
      %s43 = sor.u32 %s41, %s42
      %p44 = scmp.eq.s32.totalorder %s43, 0
      %s46 = sadd.s32 %s45, 1
      %s47 = scalar_select %p44, %s45, %s46
      %p50 = pneg %p44
      %p51 = scmp.eq.s32.totalorder %s21, 1
      %p52 = por %p50, %p51
      %p53 = scmp.ne.s32.totalorder %s45, %s48
      %p54 = scmp.eq.s32.totalorder %s21, 0
      %p55 = por %p53, %p54
      %p56 = scmp.ne.s32.totalorder %s45, %s48
      %p57 = scmp.eq.s32.totalorder %s26, 1
      %p58 = por %p56, %p57
      %p59 = scmp.ne.s32.totalorder %s48, %s49
      %p60 = scmp.eq.s32.totalorder %s26, 0
      %p61 = por %p59, %p60
      %p62 = scmp.ne.s32.totalorder %s48, %s49
      %p63 = scmp.eq.s32.totalorder %s27, 1
      %p64 = por %p62, %p63
      %p66 = scmp.ne.s32.totalorder %s49, %s65
      %p67 = scmp.eq.s32.totalorder %s27, 0
      %p68 = por %p66, %p67
      %s69 = ssub.s32 %s29, %s36
      %p70 = scmp.eq.s32.totalorder %s69, 0
      %s72 = sadd.s32 %s71, 1
      %s73 = scalar_select %p70, %s71, %s72
      %p76 = pneg %p70
      %p77 = scmp.eq.s32.totalorder %s21, 1
      %p78 = por %p76, %p77
      %p79 = scmp.ne.s32.totalorder %s71, %s74
      %p80 = scmp.eq.s32.totalorder %s21, 0
      %p81 = por %p79, %p80
      %p82 = scmp.ne.s32.totalorder %s71, %s74
      %p83 = scmp.eq.s32.totalorder %s26, 1
      %p84 = por %p82, %p83
      %p85 = scmp.ne.s32.totalorder %s74, %s75
      %p86 = scmp.eq.s32.totalorder %s26, 0
      %p87 = por %p85, %p86
      %p88 = scmp.ne.s32.totalorder %s74, %s75
      %p89 = scmp.eq.s32.totalorder %s27, 1
      %p90 = por %p88, %p89
      %p92 = scmp.ne.s32.totalorder %s75, %s91
      %p93 = scmp.eq.s32.totalorder %s27, 0
      %p94 = por %p92, %p93
      %s95 = ssub.s32 %s28, %s40
      %p96 = scmp.eq.s32.totalorder %s95, 0
      %s98 = sadd.s32 %s97, 1
      %s99 = scalar_select %p96, %s97, %s98
      %p102 = pneg %p96
      %p103 = scmp.eq.s32.totalorder %s21, 1
      %p104 = por %p102, %p103
      %p105 = scmp.ne.s32.totalorder %s97, %s100
      %p106 = scmp.eq.s32.totalorder %s21, 0
      %p107 = por %p105, %p106
      %p108 = scmp.ne.s32.totalorder %s97, %s100
      %p109 = scmp.eq.s32.totalorder %s26, 1
      %p110 = por %p108, %p109
      %p111 = scmp.ne.s32.totalorder %s100, %s101
      %p112 = scmp.eq.s32.totalorder %s26, 0
      %p113 = por %p111, %p112
      %p114 = scmp.ne.s32.totalorder %s100, %s101
      %p115 = scmp.eq.s32.totalorder %s27, 1
      %p116 = por %p114, %p115
      %p118 = scmp.ne.s32.totalorder %s101, %s117
      %p119 = scmp.eq.s32.totalorder %s27, 0
      %p120 = por %p118, %p119
      %s122 = sadd.s32 %s121, 1
      %p125 = scmp.eq.s32.totalorder %s21, 1
      %p126 = scmp.ne.s32.totalorder %s121, %s123
      %p127 = scmp.eq.s32.totalorder %s21, 0
      %p128 = por %p126, %p127
      %p129 = scmp.ne.s32.totalorder %s121, %s123
      %p130 = scmp.eq.s32.totalorder %s26, 1
      %p131 = por %p129, %p130
      %p132 = scmp.ne.s32.totalorder %s123, %s124
      %p133 = scmp.eq.s32.totalorder %s26, 0
      %p134 = por %p132, %p133
      %p135 = scmp.ne.s32.totalorder %s123, %s124
      %p136 = scmp.eq.s32.totalorder %s27, 1
      %p137 = por %p135, %p136
      %p139 = scmp.ne.s32.totalorder %s124, %s138
      %p140 = scmp.eq.s32.totalorder %s27, 0
      %p141 = por %p139, %p140
      %s143 = sadd.s32 %s142, 1
      %p146 = scmp.eq.s32.totalorder %s21, 1
      %p147 = scmp.ne.s32.totalorder %s142, %s144
      %p148 = scmp.eq.s32.totalorder %s21, 0
      %p149 = por %p147, %p148
      %p150 = scmp.ne.s32.totalorder %s142, %s144
      %p151 = scmp.eq.s32.totalorder %s26, 1
      %p152 = por %p150, %p151
      %p153 = scmp.ne.s32.totalorder %s144, %s145
      %p154 = scmp.eq.s32.totalorder %s26, 0
      %p155 = por %p153, %p154
      %p156 = scmp.ne.s32.totalorder %s144, %s145
      %p157 = scmp.eq.s32.totalorder %s27, 1
      %p158 = por %p156, %p157
      %p160 = scmp.ne.s32.totalorder %s145, %s159
      %p161 = scmp.eq.s32.totalorder %s27, 0
      %p162 = por %p160, %p161
      %s164 = sadd.s32 %s163, 1
      %p167 = scmp.eq.s32.totalorder %s21, 1
      %p168 = scmp.ne.s32.totalorder %s163, %s165
      %p169 = scmp.eq.s32.totalorder %s21, 0
      %p170 = por %p168, %p169
      %p171 = scmp.ne.s32.totalorder %s163, %s165
      %p172 = scmp.eq.s32.totalorder %s26, 1
      %p173 = por %p171, %p172
      %p174 = scmp.ne.s32.totalorder %s165, %s166
      %p175 = scmp.eq.s32.totalorder %s26, 0
      %p176 = por %p174, %p175
      %p177 = scmp.ne.s32.totalorder %s165, %s166
      %p178 = scmp.eq.s32.totalorder %s27, 1
      %p179 = por %p177, %p178
      %p181 = scmp.ne.s32.totalorder %s166, %s180
      %p182 = scmp.eq.s32.totalorder %s27, 0
      %p183 = por %p181, %p182
      %s185 = sadd.s32 %s184, 1
      %p188 = scmp.eq.s32.totalorder %s21, 1
      %p189 = scmp.ne.s32.totalorder %s184, %s186
      %p190 = scmp.eq.s32.totalorder %s21, 0
      %p191 = por %p189, %p190
      %p192 = scmp.ne.s32.totalorder %s184, %s186
      %p193 = scmp.eq.s32.totalorder %s26, 1
      %p194 = por %p192, %p193
      %p195 = scmp.ne.s32.totalorder %s186, %s187
      %p196 = scmp.eq.s32.totalorder %s26, 0
      %p197 = por %p195, %p196
      %p198 = scmp.ne.s32.totalorder %s186, %s187
      %p199 = scmp.eq.s32.totalorder %s27, 1
      %p200 = por %p198, %p199
      %p202 = scmp.ne.s32.totalorder %s187, %s201
      %p203 = scmp.eq.s32.totalorder %s27, 0
      %p204 = por %p202, %p203
      %s205 = ssub.s32 %s28, %s40
      %p206 = scmp.eq.s32.totalorder %s205, 0
      %s208 = sadd.s32 %s207, 1
      %s209 = scalar_select %p206, %s207, %s208
      %p212 = pneg %p206
      %p213 = scmp.eq.s32.totalorder %s21, 1
      %p214 = por %p212, %p213
      %p215 = scmp.ne.s32.totalorder %s207, %s210
      %p216 = scmp.eq.s32.totalorder %s21, 0
      %p217 = por %p215, %p216
      %p218 = scmp.ne.s32.totalorder %s207, %s210
      %p219 = scmp.eq.s32.totalorder %s26, 1
      %p220 = por %p218, %p219
      %p221 = scmp.ne.s32.totalorder %s210, %s211
      %p222 = scmp.eq.s32.totalorder %s26, 0
      %p223 = por %p221, %p222
      %p224 = scmp.ne.s32.totalorder %s210, %s211
      %p225 = scmp.eq.s32.totalorder %s27, 1
      %p226 = por %p224, %p225
      %p228 = scmp.ne.s32.totalorder %s211, %s227
      %p229 = scmp.eq.s32.totalorder %s27, 0
      %p230 = por %p228, %p229
      %p231 = scmp.le.s32.totalorder 1, %s21
      %p232 = scmp.lt.s32.totalorder %s21, 3
      %p233 = pnand %p231, %p232
      %p234 = pneg %p233
      // Predicated region
      $region9: #{tpu_custom_call.1} parent=5 // pred_check
        _
      $region10: #{tpu_custom_call.1} parent=5 // pred_check_branch
        %236 = sbr.rel (%p233) target = $region12
      $region11: #{tpu_custom_call.1} parent=5 // pred_region
        %s237 = ssub.s32 %s21, 1
        // Predicated region
        $region13: #{tpu_custom_call.1} parent=11 // pred_check
          %p238 = pneg %p87
        $region14: #{tpu_custom_call.1} parent=11 // pred_check_branch
          %240 = sbr.rel (%p238) target = $region16
        $region15: #{tpu_custom_call.1} parent=11 // pred_region
          %s241 = smul.u32 32, %s31
          %s243 = ssub.s32 2048, 2048
          %244 = vsyncadd [#allocation7], %s243
          %s245 = smul.addr %s241, 64
          %s246 = scalar_lea.hbm %s1, %s245
          %s247 = sshll.u32 [#allocation6], 4
          %s248 = int_to_ptr.vmem [resolvable:$true] %s247
          %253 = dma.hbm_to_vmem [thread:$0]  %s246, 2048, %s248, [#allocation7], 64, 64, 4
        $region16: #{tpu_custom_call.1} parent=11 // pred_fallthru
          _
        // Predicated region
        $region17: #{tpu_custom_call.1} parent=11 // pred_check
          %p254 = pneg %p134
        $region18: #{tpu_custom_call.1} parent=11 // pred_check_branch
          %256 = sbr.rel (%p254) target = $region20
        $region19: #{tpu_custom_call.1} parent=11 // pred_region
          %s258 = ssub.s32 1024, 1024
          %259 = vsyncadd [#allocation7], %s258
          %s260 = sshll.u32 [#allocation9], 4
          %s261 = int_to_ptr.vmem [resolvable:$true] %s260
          %266 = dma.hbm_to_vmem [thread:$0]  %s3, 1024, %s261, [#allocation7], 64, 64, 4
        $region20: #{tpu_custom_call.1} parent=11 // pred_fallthru
          _
        // Predicated region
        $region21: #{tpu_custom_call.1} parent=11 // pred_check
          %p267 = pneg %p155
        $region22: #{tpu_custom_call.1} parent=11 // pred_check_branch
          %269 = sbr.rel (%p267) target = $region24
        $region23: #{tpu_custom_call.1} parent=11 // pred_region
          _
        $region24: #{tpu_custom_call.1} parent=11 // pred_fallthru
          _
        // Predicated region
        $region25: #{tpu_custom_call.1} parent=11 // pred_check
          %p270 = pneg %p176
        $region26: #{tpu_custom_call.1} parent=11 // pred_check_branch
          %272 = sbr.rel (%p270) target = $region28
        $region27: #{tpu_custom_call.1} parent=11 // pred_region
          %s274 = ssub.s32 1024, 1024
          %275 = vsyncadd [#allocation11], %s274
          %s276 = sshll.u32 [#allocation10], 4
          %s277 = int_to_ptr.vmem [resolvable:$true] %s276
          %282 = dma.hbm_to_vmem [thread:$0]  %s5, 1024, %s277, [#allocation11], 64, 64, 4
        $region28: #{tpu_custom_call.1} parent=11 // pred_fallthru
          _
        // Predicated region
        $region29: #{tpu_custom_call.1} parent=11 // pred_check
          %p283 = pneg %p197
        $region30: #{tpu_custom_call.1} parent=11 // pred_check_branch
          %285 = sbr.rel (%p283) target = $region32
        $region31: #{tpu_custom_call.1} parent=11 // pred_region
          _
        $region32: #{tpu_custom_call.1} parent=11 // pred_fallthru
          _
      $region12: #{tpu_custom_call.1} parent=5 // pred_fallthru
        _
      %p286 = scmp.lt.s32.totalorder %s21, 2
      // Predicated region
      $region33: #{tpu_custom_call.1} parent=5 // pred_check
        %p287 = pneg %p286
      $region34: #{tpu_custom_call.1} parent=5 // pred_check_branch
        %289 = sbr.rel (%p287) target = $region36
      $region35: #{tpu_custom_call.1} parent=5 // pred_region
        // Predicated region
        $region37: #{tpu_custom_call.1} parent=35 // pred_check
          %p290 = pneg %p55
        $region38: #{tpu_custom_call.1} parent=35 // pred_check_branch
          %292 = sbr.rel (%p290) target = $region40
        $region39: #{tpu_custom_call.1} parent=35 // pred_region
          %s293 = sand.u32 %s21, 1
          %s294 = scalar_lea.sflag [#allocation4], %s293
          %s295 = sand.u32 %s45, 1
          %s296 = smul.addr %s295, 104
          %s297 = scalar_lea.vmem [#allocation3], %s296
          %s298 = smul.u32 13, %s28
          %s299 = smul.u32 2, %s29
          %s301 = ssub.s32 1664, 1664
          %302 = vsyncadd %s294, %s301
          %s303 = smul.addr %s298, 2
          %s304 = sadd.s32 %s299, %s303
          %s305 = smul.addr %s304, 64
          %s306 = scalar_lea.hbm %s0, %s305
          %s307 = sshll.u32 %s297, 4
          %s308 = int_to_ptr.vmem [resolvable:$true] %s307
          %313 = dma.hbm_to_vmem [thread:$0]  %s306, 1664, %s308, %s294, 128, 128, 8
        $region40: #{tpu_custom_call.1} parent=35 // pred_fallthru
          _
        // Predicated region
        $region41: #{tpu_custom_call.1} parent=35 // pred_check
          %p314 = pneg %p107
        $region42: #{tpu_custom_call.1} parent=35 // pred_check_branch
          %316 = sbr.rel (%p314) target = $region44
        $region43: #{tpu_custom_call.1} parent=35 // pred_region
          %s317 = sand.u32 %s21, 1
          %s318 = scalar_lea.sflag [#allocation4], %s317
          %s319 = sand.u32 %s97, 1
          %s320 = smul.addr %s319, 52
          %s321 = scalar_lea.vmem [#allocation8], %s320
          %s322 = smul.u32 13, %s28
          %s324 = ssub.s32 832, 832
          %325 = vsyncadd %s318, %s324
          %s326 = smul.addr %s322, 64
          %s327 = scalar_lea.hbm %s2, %s326
          %s328 = sshll.u32 %s321, 4
          %s329 = int_to_ptr.vmem [resolvable:$true] %s328
          %334 = dma.hbm_to_vmem [thread:$0]  %s327, 832, %s329, %s318, 64, 64, 4
        $region44: #{tpu_custom_call.1} parent=35 // pred_fallthru
          _
      $region36: #{tpu_custom_call.1} parent=5 // pred_fallthru
        _
      %p335 = scmp.le.s32.totalorder 1, %s21
      %p336 = scmp.lt.s32.totalorder %s21, 3
      %p337 = pnand %p335, %p336
      %p338 = pneg %p337
      // Predicated region
      $region45: #{tpu_custom_call.1} parent=5 // pred_check
        _
      $region46: #{tpu_custom_call.1} parent=5 // pred_check_branch
        %340 = sbr.rel (%p337) target = $region48
      $region47: #{tpu_custom_call.1} parent=5 // pred_region
        %s341 = ssub.s32 %s21, 1
        %s342 = sand.u32 %s26, 1
        %s343 = scalar_lea.sflag [#allocation4], %s342
        %s344 = sand.u32 %s48, 1
        %s345 = smul.addr %s344, 104
        %s346 = scalar_lea.vmem [#allocation3], %s345
        // Predicated region
        $region49: #{tpu_custom_call.1} parent=47 // pred_check
          %p347 = pneg %p61
        $region50: #{tpu_custom_call.1} parent=47 // pred_check_branch
          %349 = sbr.rel (%p347) target = $region52
        $region51: #{tpu_custom_call.1} parent=47 // pred_region
          %350 = dma.done %s343, 1664
        $region52: #{tpu_custom_call.1} parent=47 // pred_fallthru
          _
        // Predicated region
        $region53: #{tpu_custom_call.1} parent=47 // pred_check
          %p351 = pneg %p87
        $region54: #{tpu_custom_call.1} parent=47 // pred_check_branch
          %353 = sbr.rel (%p351) target = $region56
        $region55: #{tpu_custom_call.1} parent=47 // pred_region
          %354 = dma.done [#allocation7], 2048
        $region56: #{tpu_custom_call.1} parent=47 // pred_fallthru
          _
        %s355 = sand.u32 %s26, 1
        %s356 = scalar_lea.sflag [#allocation4], %s355
        %s357 = sand.u32 %s100, 1
        %s358 = smul.addr %s357, 52
        %s359 = scalar_lea.vmem [#allocation8], %s358
        // Predicated region
        $region57: #{tpu_custom_call.1} parent=47 // pred_check
          %p360 = pneg %p113
        $region58: #{tpu_custom_call.1} parent=47 // pred_check_branch
          %362 = sbr.rel (%p360) target = $region60
        $region59: #{tpu_custom_call.1} parent=47 // pred_region
          %363 = dma.done %s356, 832
        $region60: #{tpu_custom_call.1} parent=47 // pred_fallthru
          _
        // Predicated region
        $region61: #{tpu_custom_call.1} parent=47 // pred_check
          %p364 = pneg %p134
        $region62: #{tpu_custom_call.1} parent=47 // pred_check_branch
          %366 = sbr.rel (%p364) target = $region64
        $region63: #{tpu_custom_call.1} parent=47 // pred_region
          %367 = dma.done [#allocation7], 1024
        $region64: #{tpu_custom_call.1} parent=47 // pred_fallthru
          _
        // Predicated region
        $region65: #{tpu_custom_call.1} parent=47 // pred_check
          %p368 = pneg %p176
        $region66: #{tpu_custom_call.1} parent=47 // pred_check_branch
          %370 = sbr.rel (%p368) target = $region68
        $region67: #{tpu_custom_call.1} parent=47 // pred_region
          %371 = dma.done [#allocation11], 1024
        $region68: #{tpu_custom_call.1} parent=47 // pred_fallthru
          _
        %s372 = sand.u32 %s26, 1
        %s373 = scalar_lea.sflag [#allocation4], %s372
        %s374 = sand.u32 %s48, 1
        %s375 = smul.addr %s374, 104
        %s376 = scalar_lea.vmem [#allocation3], %s375
        %p377 = pneg %p61
        %p378 = pneg %p58
        %p379 = pneg %p87
        %p380 = pneg %p84
        %s381 = sand.u32 %s26, 1
        %s382 = scalar_lea.sflag [#allocation4], %s381
        %s383 = sand.u32 %s100, 1
        %s384 = smul.addr %s383, 52
        %s385 = scalar_lea.vmem [#allocation8], %s384
        %p386 = pneg %p113
        %p387 = pneg %p110
        %p388 = pneg %p134
        %p389 = pneg %p131
        %p390 = pneg %p155
        %p391 = pneg %p152
        %p392 = pneg %p176
        %p393 = pneg %p173
        %p394 = pneg %p197
        %p395 = pneg %p194
        %p396 = pneg %p223
        %p397 = pneg %p220
        %s398 = sand.u32 %s210, 1
        %s399 = scalar_lea.sflag [#allocation5], %s398
        %s400 = sand.u32 %s210, 1
        %s401 = smul.addr %s400, 104
        %s402 = scalar_lea.vmem [#allocation12], %s401
        %s403 = smul.u32 13, %s30
        %s404 = smul.u32 2, %s31
        %s405 = smul.u32 32, %s31
        %s406 = smul.u32 13, %s30
        %s407 = smul.u32 13, %s30
        %p409 = scmp.eq.s32.totalorder %s31, 0
        // Predicated region
        $region69: #{tpu_custom_call.1} parent=47 // pred_check
          %p410 = pneg %p409
        $region70: #{tpu_custom_call.1} parent=47 // pred_check_branch
          %412 = sbr.rel (%p410) target = $region72
        $region71: #{tpu_custom_call.1} parent=47 // pred_region
          %413 = vst [vmem:[#allocation2] sm:$0xff] 0.0
          %414 = vst [vmem:[#allocation2 + $0x8] sm:$0xff] 0.0
          %415 = vst [vmem:[#allocation2 + $0x10] sm:$0xff] 0.0
          %416 = vst [vmem:[#allocation2 + $0x18] sm:$0xff] 0.0
          %417 = vst [vmem:[#allocation2 + $0x20] sm:$0xff] 0.0
          %418 = vst [vmem:[#allocation2 + $0x28] sm:$0xff] 0.0
          %419 = vst [vmem:[#allocation2 + $0x30] sm:$0xff] 0.0
          %420 = vst [vmem:[#allocation2 + $0x38] sm:$0xff] 0.0
          %421 = vst [vmem:[#allocation2 + $0x40] sm:$0xff] 0.0
          %422 = vst [vmem:[#allocation2 + $0x48] sm:$0xff] 0.0
          %423 = vst [vmem:[#allocation2 + $0x50] sm:$0xff] 0.0
          %424 = vst [vmem:[#allocation2 + $0x58] sm:$0xff] 0.0
          %425 = vst [vmem:[#allocation2 + $0x60] sm:$0xff] 0.0
        $region72: #{tpu_custom_call.1} parent=47 // pred_fallthru
          _
        %v426 = vld [vmem:[#allocation2] sm:$0xff]
        %v427 = vld [vmem:[#allocation2 + $0x8] sm:$0xff]
        %v428 = vld [vmem:[#allocation2 + $0x10] sm:$0xff]
        %v429 = vld [vmem:[#allocation2 + $0x18] sm:$0xff]
        %v430 = vld [vmem:[#allocation2 + $0x20] sm:$0xff]
        %v431 = vld [vmem:[#allocation2 + $0x28] sm:$0xff]
        %v432 = vld [vmem:[#allocation2 + $0x30] sm:$0xff]
        %v433 = vld [vmem:[#allocation2 + $0x38] sm:$0xff]
        %v434 = vld [vmem:[#allocation2 + $0x40] sm:$0xff]
        %v435 = vld [vmem:[#allocation2 + $0x48] sm:$0xff]
        %v436 = vld [vmem:[#allocation2 + $0x50] sm:$0xff]
        %v437 = vld [vmem:[#allocation2 + $0x58] sm:$0xff]
        %v438 = vld [vmem:[#allocation2 + $0x60] sm:$0xff]
        %v439 = vld [vmem:[%s346] sm:$0xff]
        %v440 = vld [vmem:[%s346 + $0x8] sm:$0xff]
        %v441 = vld [vmem:[%s346 + $0x10] sm:$0xff]
        %v442 = vld [vmem:[%s346 + $0x18] sm:$0xff]
        %v443 = vld [vmem:[%s346 + $0x20] sm:$0xff]
        %v444 = vld [vmem:[%s346 + $0x28] sm:$0xff]
        %v445 = vld [vmem:[%s346 + $0x30] sm:$0xff]
        %v446 = vld [vmem:[%s346 + $0x38] sm:$0xff]
        %v447 = vld [vmem:[%s346 + $0x40] sm:$0xff]
        %v448 = vld [vmem:[%s346 + $0x48] sm:$0xff]
        %v449 = vld [vmem:[%s346 + $0x50] sm:$0xff]
        %v450 = vld [vmem:[%s346 + $0x58] sm:$0xff]
        %v451 = vld [vmem:[%s346 + $0x60] sm:$0xff]
        %v452 = vld [vmem:[#allocation6] sm:$0xf]
        %v453 = vld [vmem:[#allocation6 + $0x4] sm:$0xf]
        %v454 = vld [vmem:[#allocation6 + $0x8] sm:$0xf]
        %v455 = vld [vmem:[#allocation6 + $0xc] sm:$0xf]
        %v456 = vld [vmem:[#allocation6 + $0x10] sm:$0xf]
        %v457 = vld [vmem:[#allocation6 + $0x14] sm:$0xf]
        %v458 = vld [vmem:[#allocation6 + $0x18] sm:$0xf]
        %v459 = vld [vmem:[#allocation6 + $0x1c] sm:$0xf]
        %v460 = vld [vmem:[#allocation6 + $0x20] sm:$0xf]
        %v461 = vld [vmem:[#allocation6 + $0x24] sm:$0xf]
        %v462 = vld [vmem:[#allocation6 + $0x28] sm:$0xf]
        %v463 = vld [vmem:[#allocation6 + $0x2c] sm:$0xf]
        %v464 = vld [vmem:[#allocation6 + $0x30] sm:$0xf]
        %v465 = vld [vmem:[#allocation6 + $0x34] sm:$0xf]
        %v466 = vld [vmem:[#allocation6 + $0x38] sm:$0xf]
        %v467 = vld [vmem:[#allocation6 + $0x3c] sm:$0xf]
        %v468 = vld [vmem:[#allocation6 + $0x40] sm:$0xf]
        %v469 = vld [vmem:[#allocation6 + $0x44] sm:$0xf]
        %v470 = vld [vmem:[#allocation6 + $0x48] sm:$0xf]
        %v471 = vld [vmem:[#allocation6 + $0x4c] sm:$0xf]
        %v472 = vld [vmem:[#allocation6 + $0x50] sm:$0xf]
        %v473 = vld [vmem:[#allocation6 + $0x54] sm:$0xf]
        %v474 = vld [vmem:[#allocation6 + $0x58] sm:$0xf]
        %v475 = vld [vmem:[#allocation6 + $0x5c] sm:$0xf]
        %v476 = vld [vmem:[#allocation6 + $0x60] sm:$0xf]
        %v477 = vld [vmem:[#allocation6 + $0x64] sm:$0xf]
        %v478 = vld [vmem:[#allocation6 + $0x68] sm:$0xf]
        %v479 = vld [vmem:[#allocation6 + $0x6c] sm:$0xf]
        %v480 = vld [vmem:[#allocation6 + $0x70] sm:$0xf]
        %v481 = vld [vmem:[#allocation6 + $0x74] sm:$0xf]
        %v482 = vld [vmem:[#allocation6 + $0x78] sm:$0xf]
        %v483 = vld [vmem:[#allocation6 + $0x7c] sm:$0xf]
        %v497 = vunpack.c.l.b16 %v439
        %v498 = vunpack.c.h.b16 %v439
        %v499 = vunpack.c.l.b16 %v440
        %v500 = vunpack.c.h.b16 %v440
        %v501 = vunpack.c.l.b16 %v441
        %v502 = vunpack.c.h.b16 %v441
        %v503 = vunpack.c.l.b16 %v442
        %v504 = vunpack.c.h.b16 %v442
        %v505 = vunpack.c.l.b16 %v443
        %v506 = vunpack.c.h.b16 %v443
        %v507 = vunpack.c.l.b16 %v444
        %v508 = vunpack.c.h.b16 %v444
        %v509 = vunpack.c.l.b16 %v445
        %v510 = vunpack.c.h.b16 %v445
        %v511 = vunpack.c.l.b16 %v446
        %v512 = vunpack.c.h.b16 %v446
        %v513 = vunpack.c.l.b16 %v447
        %v514 = vunpack.c.h.b16 %v447
        %v515 = vunpack.c.l.b16 %v448
        %v516 = vunpack.c.h.b16 %v448
        %v517 = vunpack.c.l.b16 %v449
        %v518 = vunpack.c.h.b16 %v449
        %v519 = vunpack.c.l.b16 %v450
        %v520 = vunpack.c.h.b16 %v450
        %v521 = vunpack.c.l.b16 %v451
        %v522 = vunpack.c.h.b16 %v451
        %v523 = vpack.c.b16 %v499, %v497
        %v524 = vpack.c.b16 %v500, %v498
        %v525 = vpack.c.b16 %v503, %v501
        %v526 = vpack.c.b16 %v504, %v502
        %v527 = vpack.c.b16 %v507, %v505
        %v528 = vpack.c.b16 %v508, %v506
        %v529 = vpack.c.b16 %v511, %v509
        %v530 = vpack.c.b16 %v512, %v510
        %v531 = vpack.c.b16 %v515, %v513
        %v532 = vpack.c.b16 %v516, %v514
        %v533 = vpack.c.b16 %v519, %v517
        %v534 = vpack.c.b16 %v520, %v518
        %v535 = vpack.c.b16 %v521, %v521
        %v536 = vpack.c.b16 %v522, %v522
        %v583 = vunpack.c.l.b16 %v452
        %v584 = vunpack.c.l.b16 %v453
        %v585 = vunpack.c.l.b16 %v454
        %v586 = vunpack.c.l.b16 %v455
        %v587 = vunpack.c.l.b16 %v456
        %v588 = vunpack.c.l.b16 %v457
        %v589 = vunpack.c.l.b16 %v458
        %v590 = vunpack.c.l.b16 %v459
        %v591 = vunpack.c.l.b16 %v460
        %v592 = vunpack.c.l.b16 %v461
        %v593 = vunpack.c.l.b16 %v462
        %v594 = vunpack.c.l.b16 %v463
        %v595 = vunpack.c.l.b16 %v464
        %v596 = vunpack.c.l.b16 %v465
        %v597 = vunpack.c.l.b16 %v466
        %v598 = vunpack.c.l.b16 %v467
        %v599 = vunpack.c.l.b16 %v468
        %v600 = vunpack.c.l.b16 %v469
        %v601 = vunpack.c.l.b16 %v470
        %v602 = vunpack.c.l.b16 %v471
        %v603 = vunpack.c.l.b16 %v472
        %v604 = vunpack.c.l.b16 %v473
        %v605 = vunpack.c.l.b16 %v474
        %v606 = vunpack.c.l.b16 %v475
        %v607 = vunpack.c.l.b16 %v476
        %v608 = vunpack.c.l.b16 %v477
        %v609 = vunpack.c.l.b16 %v478
        %v610 = vunpack.c.l.b16 %v479
        %v611 = vunpack.c.l.b16 %v480
        %v612 = vunpack.c.l.b16 %v481
        %v613 = vunpack.c.l.b16 %v482
        %v614 = vunpack.c.l.b16 %v483
        %v615 = vpack.c.b16 %v584, %v583
        %v616 = vpack.c.b16 %v586, %v585
        %v617 = vpack.c.b16 %v588, %v587
        %v618 = vpack.c.b16 %v590, %v589
        %v619 = vpack.c.b16 %v592, %v591
        %v620 = vpack.c.b16 %v594, %v593
        %v621 = vpack.c.b16 %v596, %v595
        %v622 = vpack.c.b16 %v598, %v597
        %v623 = vpack.c.b16 %v600, %v599
        %v624 = vpack.c.b16 %v602, %v601
        %v625 = vpack.c.b16 %v604, %v603
        %v626 = vpack.c.b16 %v606, %v605
        %v627 = vpack.c.b16 %v608, %v607
        %v628 = vpack.c.b16 %v610, %v609
        %v629 = vpack.c.b16 %v612, %v611
        %v630 = vpack.c.b16 %v614, %v613
        %647 = vmatprep.subr.bf16.mxu0 0
        %648 = vmatpush1.bf16.msra.mxu0 %v615
        %649 = vmatprep.subr.bf16.mxu0 0
        %650 = vmatpush1.bf16.msra.mxu0 %v616
        %651 = vmatprep.subr.bf16.mxu0 0
        %652 = vmatpush1.bf16.msra.mxu0 %v617
        %653 = vmatprep.subr.bf16.mxu0 0
        %654 = vmatpush1.bf16.msra.mxu0 %v618
        %655 = vmatprep.subr.bf16.mxu0 0
        %656 = vmatpush1.bf16.msra.mxu0 %v619
        %657 = vmatprep.subr.bf16.mxu0 0
        %658 = vmatpush1.bf16.msra.mxu0 %v620
        %659 = vmatprep.subr.bf16.mxu0 0
        %660 = vmatpush1.bf16.msra.mxu0 %v621
        %661 = vmatprep.subr.bf16.mxu0 0
        %662 = vmatpush1.bf16.msra.mxu0 %v622
        %663 = vmatprep.subr.bf16.mxu0 0
        %664 = vmatpush1.bf16.msra.mxu0 %v623
        %665 = vmatprep.subr.bf16.mxu0 0
        %666 = vmatpush1.bf16.msra.mxu0 %v624
        %667 = vmatprep.subr.bf16.mxu0 0
        %668 = vmatpush1.bf16.msra.mxu0 %v625
        %669 = vmatprep.subr.bf16.mxu0 0
        %670 = vmatpush1.bf16.msra.mxu0 %v626
        %671 = vmatprep.subr.bf16.mxu0 0
        %672 = vmatpush1.bf16.msra.mxu0 %v627
        %673 = vmatprep.subr.bf16.mxu0 0
        %674 = vmatpush1.bf16.msra.mxu0 %v628
        %675 = vmatprep.subr.bf16.mxu0 0
        %676 = vmatpush1.bf16.msra.mxu0 %v629
        %677 = vmatprep.subr.bf16.mxu0 0
        %678 = vmatpush1.bf16.msra.mxu0 %v630
        %679 = vmatprep.mubr.bf16.mxu0 %v524
        %680 = vmatmul.mubr.bf16.gmra.mrb[0].mxu0 %v523
        %v681 = vpop.f32.mrb[0].mxu0
        %v682 = vadd.f32 0.0, %v681
        %v683 = vpop.f32.mrb[0].mxu0
        %v684 = vpop.f32.mrb[0].mxu0
        %v685 = vadd.f32 0.0, %v684
        %v686 = vpop.f32.mrb[0].mxu0
        %687 = vmatprep.mubr.bf16.mxu0 %v526
        %688 = vmatmul.mubr.bf16.gmra.mrb[0].mxu0 %v525
        %v689 = vpop.f32.mrb[0].mxu0
        %v690 = vadd.f32 0.0, %v689
        %v691 = vpop.f32.mrb[0].mxu0
        %v692 = vpop.f32.mrb[0].mxu0
        %v693 = vadd.f32 0.0, %v692
        %v694 = vpop.f32.mrb[0].mxu0
        %695 = vmatprep.mubr.bf16.mxu0 %v528
        %696 = vmatmul.mubr.bf16.gmra.mrb[0].mxu0 %v527
        %v697 = vpop.f32.mrb[0].mxu0
        %v698 = vadd.f32 0.0, %v697
        %v699 = vpop.f32.mrb[0].mxu0
        %v700 = vpop.f32.mrb[0].mxu0
        %v701 = vadd.f32 0.0, %v700
        %v702 = vpop.f32.mrb[0].mxu0
        %703 = vmatprep.mubr.bf16.mxu0 %v530
        %704 = vmatmul.mubr.bf16.gmra.mrb[0].mxu0 %v529
        %v705 = vpop.f32.mrb[0].mxu0
        %v706 = vadd.f32 0.0, %v705
        %v707 = vpop.f32.mrb[0].mxu0
        %v708 = vpop.f32.mrb[0].mxu0
        %v709 = vadd.f32 0.0, %v708
        %v710 = vpop.f32.mrb[0].mxu0
        %711 = vmatprep.mubr.bf16.mxu0 %v532
        %712 = vmatmul.mubr.bf16.gmra.mrb[0].mxu0 %v531
        %v713 = vpop.f32.mrb[0].mxu0
        %v714 = vadd.f32 0.0, %v713
        %v715 = vpop.f32.mrb[0].mxu0
        %v716 = vpop.f32.mrb[0].mxu0
        %v717 = vadd.f32 0.0, %v716
        %v718 = vpop.f32.mrb[0].mxu0
        %719 = vmatprep.mubr.bf16.mxu0 %v534
        %720 = vmatmul.mubr.bf16.gmra.mrb[0].mxu0 %v533
        %v721 = vpop.f32.mrb[0].mxu0
        %v722 = vadd.f32 0.0, %v721
        %v723 = vpop.f32.mrb[0].mxu0
        %v724 = vpop.f32.mrb[0].mxu0
        %v725 = vadd.f32 0.0, %v724
        %v726 = vpop.f32.mrb[0].mxu0
        %727 = vmatprep.mubr.bf16.mxu0 %v536
        %728 = vmatmul.mubr.bf16.gmra.mrb[0].mxu0 %v535
        %v729 = vpop.f32.mrb[0].mxu0
        %v730 = vadd.f32 0.0, %v729
        %v731 = vpop.f32.mrb[0].mxu0
        %v732 = vpop.f32.mrb[0].mxu0
        %v733 = vpop.f32.mrb[0].mxu0
        %734 = vdwg.mxu0
        %v735 = vadd.f32 %v426, %v682
        %v736 = vadd.f32 %v427, %v685
        %v737 = vadd.f32 %v428, %v690
        %v738 = vadd.f32 %v429, %v693
        %v739 = vadd.f32 %v430, %v698
        %v740 = vadd.f32 %v431, %v701
        %v741 = vadd.f32 %v432, %v706
        %v742 = vadd.f32 %v433, %v709
        %v743 = vadd.f32 %v434, %v714
        %v744 = vadd.f32 %v435, %v717
        %v745 = vadd.f32 %v436, %v722
        %v746 = vadd.f32 %v437, %v725
        %v747 = vadd.f32 %v438, %v730
        %748 = vst [vmem:[#allocation2] sm:$0xff] %v735
        %749 = vst [vmem:[#allocation2 + $0x8] sm:$0xff] %v736
        %750 = vst [vmem:[#allocation2 + $0x10] sm:$0xff] %v737
        %751 = vst [vmem:[#allocation2 + $0x18] sm:$0xff] %v738
        %752 = vst [vmem:[#allocation2 + $0x20] sm:$0xff] %v739
        %753 = vst [vmem:[#allocation2 + $0x28] sm:$0xff] %v740
        %754 = vst [vmem:[#allocation2 + $0x30] sm:$0xff] %v741
        %755 = vst [vmem:[#allocation2 + $0x38] sm:$0xff] %v742
        %756 = vst [vmem:[#allocation2 + $0x40] sm:$0xff] %v743
        %757 = vst [vmem:[#allocation2 + $0x48] sm:$0xff] %v744
        %758 = vst [vmem:[#allocation2 + $0x50] sm:$0xff] %v745
        %759 = vst [vmem:[#allocation2 + $0x58] sm:$0xff] %v746
        %760 = vst [vmem:[#allocation2 + $0x60] sm:$0xff] %v747
        // Predicated region
        $region73: #{tpu_custom_call.1} parent=47 // pred_check
          %p761 = pneg %p409
        $region74: #{tpu_custom_call.1} parent=47 // pred_check_branch
          %763 = sbr.rel (%p761) target = $region76
        $region75: #{tpu_custom_call.1} parent=47 // pred_region
          %v764 = vld [vmem:[#allocation2] sm:$0xff]
          %v765 = vld [vmem:[#allocation2 + $0x8] sm:$0xff]
          %v766 = vld [vmem:[#allocation2 + $0x10] sm:$0xff]
          %v767 = vld [vmem:[#allocation2 + $0x18] sm:$0xff]
          %v768 = vld [vmem:[#allocation2 + $0x20] sm:$0xff]
          %v769 = vld [vmem:[#allocation2 + $0x28] sm:$0xff]
          %v770 = vld [vmem:[#allocation2 + $0x30] sm:$0xff]
          %v771 = vld [vmem:[#allocation2 + $0x38] sm:$0xff]
          %v772 = vld [vmem:[#allocation2 + $0x40] sm:$0xff]
          %v773 = vld [vmem:[#allocation2 + $0x48] sm:$0xff]
          %v774 = vld [vmem:[#allocation2 + $0x50] sm:$0xff]
          %v775 = vld [vmem:[#allocation2 + $0x58] sm:$0xff]
          %v776 = vld [vmem:[#allocation2 + $0x60] sm:$0xff]
          %v777 = vmax.f32 %v764, 0.0
          %v778 = vmax.f32 %v765, 0.0
          %v779 = vmax.f32 %v766, 0.0
          %v780 = vmax.f32 %v767, 0.0
          %v781 = vmax.f32 %v768, 0.0
          %v782 = vmax.f32 %v769, 0.0
          %v783 = vmax.f32 %v770, 0.0
          %v784 = vmax.f32 %v771, 0.0
          %v785 = vmax.f32 %v772, 0.0
          %v786 = vmax.f32 %v773, 0.0
          %v787 = vmax.f32 %v774, 0.0
          %v788 = vmax.f32 %v775, 0.0
          %v789 = vmax.f32 %v776, 0.0
          %v790 = vld [vmem:[%s359] sm:$0xf]
          %v791 = vld [vmem:[%s359 + $0x4] sm:$0xf]
          %v792 = vld [vmem:[%s359 + $0x8] sm:$0xf]
          %v793 = vld [vmem:[%s359 + $0xc] sm:$0xf]
          %v794 = vld [vmem:[%s359 + $0x10] sm:$0xf]
          %v795 = vld [vmem:[%s359 + $0x14] sm:$0xf]
          %v796 = vld [vmem:[%s359 + $0x18] sm:$0xf]
          %v797 = vld [vmem:[%s359 + $0x1c] sm:$0xf]
          %v798 = vld [vmem:[%s359 + $0x20] sm:$0xf]
          %v799 = vld [vmem:[%s359 + $0x24] sm:$0xf]
          %v800 = vld [vmem:[%s359 + $0x28] sm:$0xf]
          %v801 = vld [vmem:[%s359 + $0x2c] sm:$0xf]
          %v802 = vld [vmem:[%s359 + $0x30] sm:$0xf]
          %v803 = vunpack.c.l.bf16 %v790
          %v804 = vunpack.c.l.bf16 %v791
          %v805 = vunpack.c.l.bf16 %v792
          %v806 = vunpack.c.l.bf16 %v793
          %v807 = vunpack.c.l.bf16 %v794
          %v808 = vunpack.c.l.bf16 %v795
          %v809 = vunpack.c.l.bf16 %v796
          %v810 = vunpack.c.l.bf16 %v797
          %v811 = vunpack.c.l.bf16 %v798
          %v812 = vunpack.c.l.bf16 %v799
          %v813 = vunpack.c.l.bf16 %v800
          %v814 = vunpack.c.l.bf16 %v801
          %v815 = vunpack.c.l.bf16 %v802
          %v816 = vadd.f32 %v803, %v777
          %v817 = vadd.f32 %v804, %v778
          %v818 = vadd.f32 %v805, %v779
          %v819 = vadd.f32 %v806, %v780
          %v820 = vadd.f32 %v807, %v781
          %v821 = vadd.f32 %v808, %v782
          %v822 = vadd.f32 %v809, %v783
          %v823 = vadd.f32 %v810, %v784
          %v824 = vadd.f32 %v811, %v785
          %v825 = vadd.f32 %v812, %v786
          %v826 = vadd.f32 %v813, %v787
          %v827 = vadd.f32 %v814, %v788
          %v828 = vadd.f32 %v815, %v789
          %v829 = vpack.c.bf16 %v817, %v816
          %v830 = vpack.c.bf16 %v819, %v818
          %v831 = vpack.c.bf16 %v821, %v820
          %v832 = vpack.c.bf16 %v823, %v822
          %v833 = vpack.c.bf16 %v825, %v824
          %v834 = vpack.c.bf16 %v827, %v826
          %v835 = vpack.c.bf16 %v828, %v828
          %v836 = vld [vmem:[#allocation9] sm:$0xf]
          %v837 = vld [vmem:[#allocation9 + $0x4] sm:$0xf]
          %v838 = vld [vmem:[#allocation9 + $0x8] sm:$0xf]
          %v839 = vld [vmem:[#allocation9 + $0xc] sm:$0xf]
          %v840 = vld [vmem:[#allocation9 + $0x10] sm:$0xf]
          %v841 = vld [vmem:[#allocation9 + $0x14] sm:$0xf]
          %v842 = vld [vmem:[#allocation9 + $0x18] sm:$0xf]
          %v843 = vld [vmem:[#allocation9 + $0x1c] sm:$0xf]
          %v844 = vld [vmem:[#allocation9 + $0x20] sm:$0xf]
          %v845 = vld [vmem:[#allocation9 + $0x24] sm:$0xf]
          %v846 = vld [vmem:[#allocation9 + $0x28] sm:$0xf]
          %v847 = vld [vmem:[#allocation9 + $0x2c] sm:$0xf]
          %v848 = vld [vmem:[#allocation9 + $0x30] sm:$0xf]
          %v849 = vld [vmem:[#allocation9 + $0x34] sm:$0xf]
          %v850 = vld [vmem:[#allocation9 + $0x38] sm:$0xf]
          %v851 = vld [vmem:[#allocation9 + $0x3c] sm:$0xf]
          %v852 = vld [vmem:[%s4] sm:$0x1]
          %v854 = vlaneseq
          %v855 = vshrl.u32 %v854, 7
          %v856 = vsub.s32 0, %v855
          %v857 = vrot.slane %v852, %v856
          %v875 = vunpack.c.l.b16 %v836
          %v876 = vunpack.c.l.b16 %v837
          %v877 = vunpack.c.l.b16 %v838
          %v878 = vunpack.c.l.b16 %v839
          %v879 = vunpack.c.l.b16 %v840
          %v880 = vunpack.c.l.b16 %v841
          %v881 = vunpack.c.l.b16 %v842
          %v882 = vunpack.c.l.b16 %v843
          %v883 = vunpack.c.l.b16 %v844
          %v884 = vunpack.c.l.b16 %v845
          %v885 = vunpack.c.l.b16 %v846
          %v886 = vunpack.c.l.b16 %v847
          %v887 = vunpack.c.l.b16 %v848
          %v888 = vunpack.c.l.b16 %v849
          %v889 = vunpack.c.l.b16 %v850
          %v890 = vunpack.c.l.b16 %v851
          %v891 = vpack.c.b16 %v876, %v875
          %v892 = vpack.c.b16 %v878, %v877
          %v893 = vpack.c.b16 %v880, %v879
          %v894 = vpack.c.b16 %v882, %v881
          %v895 = vpack.c.b16 %v884, %v883
          %v896 = vpack.c.b16 %v886, %v885
          %v897 = vpack.c.b16 %v888, %v887
          %v898 = vpack.c.b16 %v890, %v889
          %907 = vmatprep.subr.bf16.mxu0 0
          %908 = vmatpush1.bf16.msra.mxu0 %v891
          %909 = vmatprep.subr.bf16.mxu0 0
          %910 = vmatpush1.bf16.msra.mxu0 %v892
          %911 = vmatprep.subr.bf16.mxu0 0
          %912 = vmatpush1.bf16.msra.mxu0 %v893
          %913 = vmatprep.subr.bf16.mxu0 0
          %914 = vmatpush1.bf16.msra.mxu0 %v894
          %915 = vmatprep.subr.bf16.mxu0 0
          %916 = vmatpush1.bf16.msra.mxu0 %v895
          %917 = vmatprep.subr.bf16.mxu0 0
          %918 = vmatpush1.bf16.msra.mxu0 %v896
          %919 = vmatprep.subr.bf16.mxu0 0
          %920 = vmatpush1.bf16.msra.mxu0 %v897
          %921 = vmatprep.subr.bf16.mxu0 0
          %922 = vmatpush1.bf16.msra.mxu0 %v898
          %923 = vmatprep.subr.bf16.mxu0 0
          %924 = vmatpush1.bf16.msra.mxu0 0
          %925 = vmatprep.subr.bf16.mxu0 0
          %926 = vmatpush1.bf16.msra.mxu0 0
          %927 = vmatprep.subr.bf16.mxu0 0
          %928 = vmatpush1.bf16.msra.mxu0 0
          %929 = vmatprep.subr.bf16.mxu0 0
          %930 = vmatpush1.bf16.msra.mxu0 0
          %931 = vmatprep.subr.bf16.mxu0 0
          %932 = vmatpush1.bf16.msra.mxu0 0
          %933 = vmatprep.subr.bf16.mxu0 0
          %934 = vmatpush1.bf16.msra.mxu0 0
          %935 = vmatprep.subr.bf16.mxu0 0
          %936 = vmatpush1.bf16.msra.mxu0 0
          %937 = vmatprep.subr.bf16.mxu0 0
          %938 = vmatpush1.bf16.msra.mxu0 0
          %939 = vmatprep.mubr.bf16.mxu0 0
          %940 = vmatmul.mubr.bf16.gmra.mrb[0].mxu0 %v829
          %v941 = vpop.f32.mrb[0].mxu0
          %v942 = vadd.f32 %v857, %v941
          %v943 = vpop.f32.mrb[0].mxu0
          %v944 = vpop.f32.mrb[0].mxu0
          %v945 = vadd.f32 %v857, %v944
          %v946 = vpop.f32.mrb[0].mxu0
          %947 = vmatprep.mubr.bf16.mxu0 0
          %948 = vmatmul.mubr.bf16.gmra.mrb[0].mxu0 %v830
          %v949 = vpop.f32.mrb[0].mxu0
          %v950 = vadd.f32 %v857, %v949
          %v951 = vpop.f32.mrb[0].mxu0
          %v952 = vpop.f32.mrb[0].mxu0
          %v953 = vadd.f32 %v857, %v952
          %v954 = vpop.f32.mrb[0].mxu0
          %955 = vmatprep.mubr.bf16.mxu0 0
          %956 = vmatmul.mubr.bf16.gmra.mrb[0].mxu0 %v831
          %v957 = vpop.f32.mrb[0].mxu0
          %v958 = vadd.f32 %v857, %v957
          %v959 = vpop.f32.mrb[0].mxu0
          %v960 = vpop.f32.mrb[0].mxu0
          %v961 = vadd.f32 %v857, %v960
          %v962 = vpop.f32.mrb[0].mxu0
          %963 = vmatprep.mubr.bf16.mxu0 0
          %964 = vmatmul.mubr.bf16.gmra.mrb[0].mxu0 %v832
          %v965 = vpop.f32.mrb[0].mxu0
          %v966 = vadd.f32 %v857, %v965
          %v967 = vpop.f32.mrb[0].mxu0
          %v968 = vpop.f32.mrb[0].mxu0
          %v969 = vadd.f32 %v857, %v968
          %v970 = vpop.f32.mrb[0].mxu0
          %971 = vmatprep.mubr.bf16.mxu0 0
          %972 = vmatmul.mubr.bf16.gmra.mrb[0].mxu0 %v833
          %v973 = vpop.f32.mrb[0].mxu0
          %v974 = vadd.f32 %v857, %v973
          %v975 = vpop.f32.mrb[0].mxu0
          %v976 = vpop.f32.mrb[0].mxu0
          %v977 = vadd.f32 %v857, %v976
          %v978 = vpop.f32.mrb[0].mxu0
          %979 = vmatprep.mubr.bf16.mxu0 0
          %980 = vmatmul.mubr.bf16.gmra.mrb[0].mxu0 %v834
          %v981 = vpop.f32.mrb[0].mxu0
          %v982 = vadd.f32 %v857, %v981
          %v983 = vpop.f32.mrb[0].mxu0
          %v984 = vpop.f32.mrb[0].mxu0
          %v985 = vadd.f32 %v857, %v984
          %v986 = vpop.f32.mrb[0].mxu0
          %987 = vmatprep.mubr.bf16.mxu0 0
          %988 = vmatmul.mubr.bf16.gmra.mrb[0].mxu0 %v835
          %v989 = vpop.f32.mrb[0].mxu0
          %v990 = vadd.f32 %v857, %v989
          %v991 = vpop.f32.mrb[0].mxu0
          %v992 = vpop.f32.mrb[0].mxu0
          %v993 = vpop.f32.mrb[0].mxu0
          %994 = vdwg.mxu0
          %v995 = vmax.f32 %v942, 0.0
          %v996 = vmax.f32 %v945, 0.0
          %v997 = vmax.f32 %v950, 0.0
          %v998 = vmax.f32 %v953, 0.0
          %v999 = vmax.f32 %v958, 0.0
          %v1000 = vmax.f32 %v961, 0.0
          %v1001 = vmax.f32 %v966, 0.0
          %v1002 = vmax.f32 %v969, 0.0
          %v1003 = vmax.f32 %v974, 0.0
          %v1004 = vmax.f32 %v977, 0.0
          %v1005 = vmax.f32 %v982, 0.0
          %v1006 = vmax.f32 %v985, 0.0
          %v1007 = vmax.f32 %v990, 0.0
          %v1008 = vpack.c.bf16 %v996, %v995
          %v1009 = vpack.c.bf16 %v998, %v997
          %v1010 = vpack.c.bf16 %v1000, %v999
          %v1011 = vpack.c.bf16 %v1002, %v1001
          %v1012 = vpack.c.bf16 %v1004, %v1003
          %v1013 = vpack.c.bf16 %v1006, %v1005
          %v1014 = vpack.c.bf16 %v1007, %v1007
          %v1015 = vld [vmem:[#allocation10] sm:$0xf]
          %v1016 = vld [vmem:[#allocation10 + $0x4] sm:$0xf]
          %v1017 = vld [vmem:[#allocation10 + $0x8] sm:$0xf]
          %v1018 = vld [vmem:[#allocation10 + $0xc] sm:$0xf]
          %v1019 = vld [vmem:[#allocation10 + $0x10] sm:$0xf]
          %v1020 = vld [vmem:[#allocation10 + $0x14] sm:$0xf]
          %v1021 = vld [vmem:[#allocation10 + $0x18] sm:$0xf]
          %v1022 = vld [vmem:[#allocation10 + $0x1c] sm:$0xf]
          %v1023 = vld [vmem:[#allocation10 + $0x20] sm:$0xf]
          %v1024 = vld [vmem:[#allocation10 + $0x24] sm:$0xf]
          %v1025 = vld [vmem:[#allocation10 + $0x28] sm:$0xf]
          %v1026 = vld [vmem:[#allocation10 + $0x2c] sm:$0xf]
          %v1027 = vld [vmem:[#allocation10 + $0x30] sm:$0xf]
          %v1028 = vld [vmem:[#allocation10 + $0x34] sm:$0xf]
          %v1029 = vld [vmem:[#allocation10 + $0x38] sm:$0xf]
          %v1030 = vld [vmem:[#allocation10 + $0x3c] sm:$0xf]
          %v1031 = vld [vmem:[%s6] sm:$0x1]
          %v1033 = vlaneseq
          %v1034 = vshrl.u32 %v1033, 7
          %v1035 = vsub.s32 0, %v1034
          %v1036 = vrot.slane %v1031, %v1035
          %v1054 = vunpack.c.l.b16 %v1015
          %v1055 = vunpack.c.l.b16 %v1016
          %v1056 = vunpack.c.l.b16 %v1017
          %v1057 = vunpack.c.l.b16 %v1018
          %v1058 = vunpack.c.l.b16 %v1019
          %v1059 = vunpack.c.l.b16 %v1020
          %v1060 = vunpack.c.l.b16 %v1021
          %v1061 = vunpack.c.l.b16 %v1022
          %v1062 = vunpack.c.l.b16 %v1023
          %v1063 = vunpack.c.l.b16 %v1024
          %v1064 = vunpack.c.l.b16 %v1025
          %v1065 = vunpack.c.l.b16 %v1026
          %v1066 = vunpack.c.l.b16 %v1027
          %v1067 = vunpack.c.l.b16 %v1028
          %v1068 = vunpack.c.l.b16 %v1029
          %v1069 = vunpack.c.l.b16 %v1030
          %v1070 = vpack.c.b16 %v1055, %v1054
          %v1071 = vpack.c.b16 %v1057, %v1056
          %v1072 = vpack.c.b16 %v1059, %v1058
          %v1073 = vpack.c.b16 %v1061, %v1060
          %v1074 = vpack.c.b16 %v1063, %v1062
          %v1075 = vpack.c.b16 %v1065, %v1064
          %v1076 = vpack.c.b16 %v1067, %v1066
          %v1077 = vpack.c.b16 %v1069, %v1068
          %1086 = vmatprep.subr.bf16.mxu0 0
          %1087 = vmatpush1.bf16.msra.mxu0 %v1070
          %1088 = vmatprep.subr.bf16.mxu0 0
          %1089 = vmatpush1.bf16.msra.mxu0 %v1071
          %1090 = vmatprep.subr.bf16.mxu0 0
          %1091 = vmatpush1.bf16.msra.mxu0 %v1072
          %1092 = vmatprep.subr.bf16.mxu0 0
          %1093 = vmatpush1.bf16.msra.mxu0 %v1073
          %1094 = vmatprep.subr.bf16.mxu0 0
          %1095 = vmatpush1.bf16.msra.mxu0 %v1074
          %1096 = vmatprep.subr.bf16.mxu0 0
          %1097 = vmatpush1.bf16.msra.mxu0 %v1075
          %1098 = vmatprep.subr.bf16.mxu0 0
          %1099 = vmatpush1.bf16.msra.mxu0 %v1076
          %1100 = vmatprep.subr.bf16.mxu0 0
          %1101 = vmatpush1.bf16.msra.mxu0 %v1077
          %1102 = vmatprep.subr.bf16.mxu0 0
          %1103 = vmatpush1.bf16.msra.mxu0 0
          %1104 = vmatprep.subr.bf16.mxu0 0
          %1105 = vmatpush1.bf16.msra.mxu0 0
          %1106 = vmatprep.subr.bf16.mxu0 0
          %1107 = vmatpush1.bf16.msra.mxu0 0
          %1108 = vmatprep.subr.bf16.mxu0 0
          %1109 = vmatpush1.bf16.msra.mxu0 0
          %1110 = vmatprep.subr.bf16.mxu0 0
          %1111 = vmatpush1.bf16.msra.mxu0 0
          %1112 = vmatprep.subr.bf16.mxu0 0
          %1113 = vmatpush1.bf16.msra.mxu0 0
          %1114 = vmatprep.subr.bf16.mxu0 0
          %1115 = vmatpush1.bf16.msra.mxu0 0
          %1116 = vmatprep.subr.bf16.mxu0 0
          %1117 = vmatpush1.bf16.msra.mxu0 0
          %1118 = vmatprep.mubr.bf16.mxu0 0
          %1119 = vmatmul.mubr.bf16.gmra.mrb[0].mxu0 %v1008
          %v1120 = vpop.f32.mrb[0].mxu0
          %v1121 = vadd.f32 %v1036, %v1120
          %v1122 = vpop.f32.mrb[0].mxu0
          %v1123 = vpop.f32.mrb[0].mxu0
          %v1124 = vadd.f32 %v1036, %v1123
          %v1125 = vpop.f32.mrb[0].mxu0
          %1126 = vmatprep.mubr.bf16.mxu0 0
          %1127 = vmatmul.mubr.bf16.gmra.mrb[0].mxu0 %v1009
          %v1128 = vpop.f32.mrb[0].mxu0
          %v1129 = vadd.f32 %v1036, %v1128
          %v1130 = vpop.f32.mrb[0].mxu0
          %v1131 = vpop.f32.mrb[0].mxu0
          %v1132 = vadd.f32 %v1036, %v1131
          %v1133 = vpop.f32.mrb[0].mxu0
          %1134 = vmatprep.mubr.bf16.mxu0 0
          %1135 = vmatmul.mubr.bf16.gmra.mrb[0].mxu0 %v1010
          %v1136 = vpop.f32.mrb[0].mxu0
          %v1137 = vadd.f32 %v1036, %v1136
          %v1138 = vpop.f32.mrb[0].mxu0
          %v1139 = vpop.f32.mrb[0].mxu0
          %v1140 = vadd.f32 %v1036, %v1139
          %v1141 = vpop.f32.mrb[0].mxu0
          %1142 = vmatprep.mubr.bf16.mxu0 0
          %1143 = vmatmul.mubr.bf16.gmra.mrb[0].mxu0 %v1011
          %v1144 = vpop.f32.mrb[0].mxu0
          %v1145 = vadd.f32 %v1036, %v1144
          %v1146 = vpop.f32.mrb[0].mxu0
          %v1147 = vpop.f32.mrb[0].mxu0
          %v1148 = vadd.f32 %v1036, %v1147
          %v1149 = vpop.f32.mrb[0].mxu0
          %1150 = vmatprep.mubr.bf16.mxu0 0
          %1151 = vmatmul.mubr.bf16.gmra.mrb[0].mxu0 %v1012
          %v1152 = vpop.f32.mrb[0].mxu0
          %v1153 = vadd.f32 %v1036, %v1152
          %v1154 = vpop.f32.mrb[0].mxu0
          %v1155 = vpop.f32.mrb[0].mxu0
          %v1156 = vadd.f32 %v1036, %v1155
          %v1157 = vpop.f32.mrb[0].mxu0
          %1158 = vmatprep.mubr.bf16.mxu0 0
          %1159 = vmatmul.mubr.bf16.gmra.mrb[0].mxu0 %v1013
          %v1160 = vpop.f32.mrb[0].mxu0
          %v1161 = vadd.f32 %v1036, %v1160
          %v1162 = vpop.f32.mrb[0].mxu0
          %v1163 = vpop.f32.mrb[0].mxu0
          %v1164 = vadd.f32 %v1036, %v1163
          %v1165 = vpop.f32.mrb[0].mxu0
          %1166 = vmatprep.mubr.bf16.mxu0 0
          %1167 = vmatmul.mubr.bf16.gmra.mrb[0].mxu0 %v1014
          %v1168 = vpop.f32.mrb[0].mxu0
          %v1169 = vadd.f32 %v1036, %v1168
          %v1170 = vpop.f32.mrb[0].mxu0
          %v1171 = vpop.f32.mrb[0].mxu0
          %v1172 = vpop.f32.mrb[0].mxu0
          %1173 = vdwg.mxu0
          %v1174 = vadd.f32 %v777, %v1121
          %v1175 = vadd.f32 %v778, %v1124
          %v1176 = vadd.f32 %v779, %v1129
          %v1177 = vadd.f32 %v780, %v1132
          %v1178 = vadd.f32 %v781, %v1137
          %v1179 = vadd.f32 %v782, %v1140
          %v1180 = vadd.f32 %v783, %v1145
          %v1181 = vadd.f32 %v784, %v1148
          %v1182 = vadd.f32 %v785, %v1153
          %v1183 = vadd.f32 %v786, %v1156
          %v1184 = vadd.f32 %v787, %v1161
          %v1185 = vadd.f32 %v788, %v1164
          %v1186 = vadd.f32 %v789, %v1169
          %1187 = vst [vmem:[%s402] sm:$0xff] %v1174
          %1188 = vst [vmem:[%s402 + $0x8] sm:$0xff] %v1175
          %1189 = vst [vmem:[%s402 + $0x10] sm:$0xff] %v1176
          %1190 = vst [vmem:[%s402 + $0x18] sm:$0xff] %v1177
          %1191 = vst [vmem:[%s402 + $0x20] sm:$0xff] %v1178
          %1192 = vst [vmem:[%s402 + $0x28] sm:$0xff] %v1179
          %1193 = vst [vmem:[%s402 + $0x30] sm:$0xff] %v1180
          %1194 = vst [vmem:[%s402 + $0x38] sm:$0xff] %v1181
          %1195 = vst [vmem:[%s402 + $0x40] sm:$0xff] %v1182
          %1196 = vst [vmem:[%s402 + $0x48] sm:$0xff] %v1183
          %1197 = vst [vmem:[%s402 + $0x50] sm:$0xff] %v1184
          %1198 = vst [vmem:[%s402 + $0x58] sm:$0xff] %v1185
          %1199 = vst [vmem:[%s402 + $0x60] sm:$0xff] %v1186
        $region76: #{tpu_custom_call.1} parent=47 // pred_fallthru
          _
        %s1200 = sand.u32 %s210, 1
        %s1201 = scalar_lea.sflag [#allocation5], %s1200
        %s1202 = sand.u32 %s210, 1
        %s1203 = smul.addr %s1202, 104
        %s1204 = scalar_lea.vmem [#allocation12], %s1203
        // Predicated region
        $region77: #{tpu_custom_call.1} parent=47 // pred_check
          %p1205 = pneg %p220
        $region78: #{tpu_custom_call.1} parent=47 // pred_check_branch
          %1207 = sbr.rel (%p1205) target = $region80
        $region79: #{tpu_custom_call.1} parent=47 // pred_region
          %s1208 = smul.u32 13, %s30
          %s1210 = ssub.s32 1664, 1664
          %1211 = vsyncadd %s1201, %s1210
          %s1212 = smul.addr %s1208, 128
          %s1213 = scalar_lea.hbm %s7, %s1212
          %s1214 = sshll.u32 %s1204, 4
          %s1215 = int_to_ptr.vmem [resolvable:$true] %s1214
          %1220 = dma.vmem_to_hbm [thread:$0]  %s1215, 1664, %s1213, %s1201, 128, 128, 8
        $region80: #{tpu_custom_call.1} parent=47 // pred_fallthru
          _
      $region48: #{tpu_custom_call.1} parent=5 // pred_fallthru
        _
      %p1221 = scmp.le.s32.totalorder 2, %s21
      // Predicated region
      $region81: #{tpu_custom_call.1} parent=5 // pred_check
        %p1222 = pneg %p1221
      $region82: #{tpu_custom_call.1} parent=5 // pred_check_branch
        %1224 = sbr.rel (%p1222) target = $region84
      $region83: #{tpu_custom_call.1} parent=5 // pred_region
        %s1225 = ssub.s32 %s21, 2
        // Predicated region
        $region85: #{tpu_custom_call.1} parent=83 // pred_check
          %p1226 = pneg %p226
        $region86: #{tpu_custom_call.1} parent=83 // pred_check_branch
          %1228 = sbr.rel (%p1226) target = $region88
        $region87: #{tpu_custom_call.1} parent=83 // pred_region
          %s1229 = sand.u32 %s211, 1
          %s1230 = scalar_lea.sflag [#allocation5], %s1229
          %s1231 = sand.u32 %s211, 1
          %s1232 = smul.addr %s1231, 104
          %s1233 = scalar_lea.vmem [#allocation12], %s1232
          %1234 = dma.done %s1230, 1664
        $region88: #{tpu_custom_call.1} parent=83 // pred_fallthru
          _
      $region84: #{tpu_custom_call.1} parent=5 // pred_fallthru
        _
    $region6: #{tpu_custom_call.1} parent=1 // loop_footer
      %s25 = sadd.s32 1, %s21
    $region7: #{tpu_custom_call.1} parent=1 // loop_footer_branch
      %20 = sbr.rel target = $region3
    $region8: #{tpu_custom_call.1} parent=1 // loop_exit
      _
    %1235 = vsyncpa [#allocation4], 1
    %s1236 = scalar_lea.sflag [#allocation4], 1
    %1237 = vsyncpa %s1236, 1
    %1238 = vsyncpa [#allocation7], 1
    %1239 = vsyncpa [#allocation11], 1
    %1240 = vsyncpa [#allocation5], 1
    %s1241 = scalar_lea.sflag [#allocation5], 1
    %1242 = vsyncpa %s1241, 1

</llo_original>
